<compile_context>
chip_gen: v7x
topology: tpu7x:2x2x1
jax: 0.10.0
libtpu: 0.0.40
codegen_flags: <defaults>
</compile_context>

<pallas_src>
import functools

import jax
import jax.numpy as jnp
from jax.experimental import pallas as pl
from jax.experimental.pallas import tpu as pltpu


def _silu(gate_f32):
    # sigmoid via EUP exp + approx reciprocal (frees VPU issue slots).
    return gate_f32 * pl.reciprocal(1.0 + jnp.exp(-gate_f32), approx=True)


def _swiglu_kernel_f32out(x_ref, w1_ref, w3_ref, w2_ref, o_ref):
    """f32 output: accumulate directly into the resident output tile."""
    j = pl.program_id(1)

    x = x_ref[...]                                                        # (tm, D)
    gate = jnp.dot(x, w1_ref[...], preferred_element_type=jnp.float32)    # (tm, th)
    up = jnp.dot(x, w3_ref[...], preferred_element_type=jnp.float32)      # (tm, th)
    h = _silu(gate) * up
    contrib = jnp.dot(h.astype(w2_ref.dtype), w2_ref[...],
                      preferred_element_type=jnp.float32)                 # (tm, D)

    @pl.when(j == 0)
    def _():
        o_ref[...] = contrib

    @pl.when(j > 0)
    def _():
        o_ref[...] += contrib


def _swiglu_kernel_acc(x_ref, w1_ref, w3_ref, w2_ref, o_ref, acc_ref):
    """Low-precision output: f32 scratch accumulator, cast once at the end."""
    j = pl.program_id(1)

    @pl.when(j == 0)
    def _():
        acc_ref[...] = jnp.zeros_like(acc_ref)

    x = x_ref[...]
    gate = jnp.dot(x, w1_ref[...], preferred_element_type=jnp.float32)
    up = jnp.dot(x, w3_ref[...], preferred_element_type=jnp.float32)
    h = _silu(gate) * up
    # NOTE: h is downcast to the weight dtype before the down-projection; with
    # bf16 weights this adds rounding a pure-f32 reference does not have.
    acc_ref[...] += jnp.dot(h.astype(w2_ref.dtype), w2_ref[...],
                            preferred_element_type=jnp.float32)

    @pl.when(j == pl.num_programs(1) - 1)
    def _():
        o_ref[...] = acc_ref[...].astype(o_ref.dtype)


def prepare_weights(w1, w2, w3):
    """Transpose torch nn.Linear (out,in) weights to (in,out) ONCE at load time.

    Do NOT call this per forward step -- that would re-materialize all weights
    in HBM every call (the exact hot-path waste the perf review flagged).
    """
    return jnp.asarray(w1).T, jnp.asarray(w2).T, jnp.asarray(w3).T


@functools.partial(jax.jit, static_argnames=("tile_m", "tile_h"))
def swiglu_mlp(x, w1t, w2t, w3t, *, tile_m=256, tile_h=256):
    """Fused SwiGLU MLP.

    x   : (..., D) activations.
    w1t : (D, H), w3t : (D, H), w2t : (H, D)  -- pre-transposed weights
          (see prepare_weights).
    """
    orig_shape = x.shape
    D = orig_shape[-1]
    H = w1t.shape[1]
    x2d = x.reshape(-1, D)
    M = x2d.shape[0]
    out_dtype = x.dtype

    # --- tile sizes (static) ------------------------------------------------
    tm = min(tile_m, M)          # full-dim block if M is small
    th = min(tile_h, H)          # full-dim block if H is small
    if H % th != 0:
        raise ValueError(f"hidden dim {H} must be divisible by tile_h={th}")

    # Pad the token axis so it tiles evenly (zero rows are harmless; sliced off).
    num_m = -(-M // tm)
    M_pad = num_m * tm
    if M_pad != M:
        x2d = jnp.pad(x2d, ((0, M_pad - M), (0, 0)))

    f32_out = out_dtype == jnp.float32

    # --- VMEM budget (double-buffered tiles + optional f32 scratch) ----------
    in_b = x.dtype.itemsize
    w_b = jnp.dtype(w1t.dtype).itemsize
    out_b = jnp.dtype(out_dtype).itemsize
    tile_bytes = 2 * (tm * D * in_b            # x tile
                      + 2 * D * th * w_b       # w1t + w3t tiles
                      + th * D * w_b           # w2t tile
                      + tm * D * out_b)        # out tile
    if not f32_out:
        tile_bytes += tm * D * 4               # f32 accumulator scratch
    vmem_limit = int(min(64 * 1024 * 1024,
                         max(32 * 1024 * 1024, (tile_bytes * 5) // 4)))

    grid = (M_pad // tm, H // th)

    if f32_out:
        kernel = _swiglu_kernel_f32out
        scratch_shapes = []
    else:
        kernel = _swiglu_kernel_acc
        scratch_shapes = [pltpu.VMEM((tm, D), jnp.float32)]

    out = pl.pallas_call(
        kernel,
        out_shape=jax.ShapeDtypeStruct((M_pad, D), out_dtype),
        grid_spec=pltpu.PrefetchScalarGridSpec(
            num_scalar_prefetch=0,
            grid=grid,
            in_specs=[
                pl.BlockSpec((tm, D), lambda i, j: (i, 0)),    # x tile
                pl.BlockSpec((D, th), lambda i, j: (0, j)),    # W1^T tile
                pl.BlockSpec((D, th), lambda i, j: (0, j)),    # W3^T tile
                pl.BlockSpec((th, D), lambda i, j: (j, 0)),    # W2^T tile
            ],
            out_specs=pl.BlockSpec((tm, D), lambda i, j: (i, 0)),
            scratch_shapes=scratch_shapes,
        ),
        compiler_params=pltpu.CompilerParams(
            # M axis parallel (megacore-shardable on v7x); H reduction last,
            # arbitrary (accumulator init/finalize pattern requires it).
            dimension_semantics=("parallel", "arbitrary"),
            vmem_limit_bytes=vmem_limit,
        ),
    )(x2d, w1t, w3t, w2t)

    if M_pad != M:
        out = out[:M]
    return out.reshape(orig_shape)


def swiglu_mlp_ref(x, w1, w2, w3):
    gate = x @ w1.T
    swish = gate * jax.nn.sigmoid(gate)
    return (swish * (x @ w3.T)) @ w2.T


if __name__ == "__main__":
    # Small shapes consistent with the module: dim=128, hidden_dim=256.
    B, T, DIM, HIDDEN = 2, 8, 128, 256

    key = jax.random.PRNGKey(0)
    kx, k1, k2, k3 = jax.random.split(key, 4)

    x = jax.random.normal(kx, (B, T, DIM), dtype=jnp.float32)
    # torch nn.Linear weight layout: (out_features, in_features)
    w1 = jax.random.normal(k1, (HIDDEN, DIM), dtype=jnp.float32) * 0.02
    w2 = jax.random.normal(k2, (DIM, HIDDEN), dtype=jnp.float32) * 0.02
    w3 = jax.random.normal(k3, (HIDDEN, DIM), dtype=jnp.float32) * 0.02

    # One-time weight prep (outside the per-step hot path).
    w1t, w2t, w3t = prepare_weights(w1, w2, w3)

    ref = swiglu_mlp_ref(x, w1, w2, w3)

    # f32 path (direct accumulation into the output tile).
    out = jax.block_until_ready(swiglu_mlp(x, w1t, w2t, w3t))
    assert out.shape == (B, T, DIM)
    # approx-reciprocal sigmoid => slightly looser tolerance than exact f32.
    assert jnp.allclose(out, ref, atol=2e-3, rtol=2e-3), "f32 mismatch vs reference"

    # bf16 path (f32 scratch accumulator, bf16 MXU inputs).
    xb = x.astype(jnp.bfloat16)
    w1tb, w2tb, w3tb = (w.astype(jnp.bfloat16) for w in (w1t, w2t, w3t))
    out_bf16 = jax.block_until_ready(swiglu_mlp(xb, w1tb, w2tb, w3tb))
    assert out_bf16.shape == (B, T, DIM)
    assert jnp.allclose(out_bf16.astype(jnp.float32), ref, atol=2e-2, rtol=2e-2), \
        "bf16 mismatch vs reference"

    print("KERNEL_OK")
</pallas_src>

<mosaic_0001>
module attributes {stable_mosaic.version = 11 : i64} {
  func.func @_swiglu_kernel_f32out(%arg0: i32, %arg1: i32, %arg2: memref<16x128xf32, #tpu.memory_space<vmem>>, %arg3: memref<128x256xf32, #tpu.memory_space<vmem>>, %arg4: memref<128x256xf32, #tpu.memory_space<vmem>>, %arg5: memref<256x128xf32, #tpu.memory_space<vmem>>, %arg6: memref<16x128xf32, #tpu.memory_space<vmem>>) attributes {dimension_semantics = [#tpu.dimension_semantics<parallel>, #tpu.dimension_semantics<arbitrary>], iteration_bounds = array<i64: 1, 1>, scalar_prefetch = 0 : i64, scratch_operands = 0 : i64, tpu.core_type = #tpu.core_type<tc>, window_params = [{transform_indices = @transform_0, window_bounds = array<i64: 16, 128>}, {transform_indices = @transform_1, window_bounds = array<i64: 128, 256>}, {transform_indices = @transform_2, window_bounds = array<i64: 128, 256>}, {transform_indices = @transform_3, window_bounds = array<i64: 256, 128>}, {transform_indices = @transform_4, window_bounds = array<i64: 16, 128>}]} {
    %c0 = arith.constant 0 : index
    %c0_0 = arith.constant 0 : index
    %0 = vector.load %arg2[%c0, %c0_0] : memref<16x128xf32, #tpu.memory_space<vmem>>, vector<16x128xf32>
    %c0_1 = arith.constant 0 : index
    %c0_2 = arith.constant 0 : index
    %1 = vector.load %arg3[%c0_1, %c0_2] : memref<128x256xf32, #tpu.memory_space<vmem>>, vector<128x256xf32>
    %cst = arith.constant dense<0.000000e+00> : vector<16x256xf32>
    %2 = tpu.matmul %0, %1, %cst {dimension_numbers = #tpu.dot_dimension_numbers<[1], [0], [0], [1], [0, 0, 1, 1], [], []>} : vector<16x128xf32>, vector<128x256xf32>, vector<16x256xf32> -> vector<16x256xf32>
    %c0_3 = arith.constant 0 : index
    %c0_4 = arith.constant 0 : index
    %3 = vector.load %arg4[%c0_3, %c0_4] : memref<128x256xf32, #tpu.memory_space<vmem>>, vector<128x256xf32>
    %cst_5 = arith.constant dense<0.000000e+00> : vector<16x256xf32>
    %4 = tpu.matmul %0, %3, %cst_5 {dimension_numbers = #tpu.dot_dimension_numbers<[1], [0], [0], [1], [0, 0, 1, 1], [], []>} : vector<16x128xf32>, vector<128x256xf32>, vector<16x256xf32> -> vector<16x256xf32>
    %cst_6 = arith.constant 0.000000e+00 : f32
    %5 = vector.broadcast %cst_6 : f32 to vector<16x256xf32>
    %6 = arith.subf %5, %2 : vector<16x256xf32>
    %7 = math.exp %6 : vector<16x256xf32>
    %cst_7 = arith.constant 1.000000e+00 : f32
    %8 = vector.broadcast %cst_7 : f32 to vector<16x256xf32>
    %9 = arith.addf %8, %7 : vector<16x256xf32>
    %10 = tpu.reciprocal %9 {approx = true} : vector<16x256xf32> -> vector<16x256xf32>
    %11 = arith.mulf %2, %10 : vector<16x256xf32>
    %12 = arith.mulf %11, %4 : vector<16x256xf32>
    %c0_8 = arith.constant 0 : index
    %c0_9 = arith.constant 0 : index
    %13 = vector.load %arg5[%c0_8, %c0_9] : memref<256x128xf32, #tpu.memory_space<vmem>>, vector<256x128xf32>
    %cst_10 = arith.constant dense<0.000000e+00> : vector<16x128xf32>
    %14 = tpu.matmul %12, %13, %cst_10 {dimension_numbers = #tpu.dot_dimension_numbers<[1], [0], [0], [1], [0, 0, 1, 1], [], []>} : vector<16x256xf32>, vector<256x128xf32>, vector<16x128xf32> -> vector<16x128xf32>
    %c0_i32 = arith.constant 0 : i32
    %15 = arith.cmpi eq, %arg1, %c0_i32 : i32
    %16 = arith.extui %15 : i1 to i32
    %c0_i32_11 = arith.constant 0 : i32
    %17 = arith.cmpi ne, %16, %c0_i32_11 : i32
    scf.if %17 {
      %c0_14 = arith.constant 0 : index
      %c0_15 = arith.constant 0 : index
      %21 = vector.load %arg6[%c0_14, %c0_15] : memref<16x128xf32, #tpu.memory_space<vmem>>, vector<16x128xf32>
      tpu.vector_store %arg6[%c0_14, %c0_15], %14 {strides = array<i32>} : memref<16x128xf32, #tpu.memory_space<vmem>>, vector<16x128xf32>,
    } else {
    }
    %c0_i32_12 = arith.constant 0 : i32
    %18 = arith.cmpi sgt, %arg1, %c0_i32_12 : i32
    %19 = arith.extui %18 : i1 to i32
    %c0_i32_13 = arith.constant 0 : i32
    %20 = arith.cmpi ne, %19, %c0_i32_13 : i32
    scf.if %20 {
      %c0_14 = arith.constant 0 : index
      %c0_15 = arith.constant 0 : index
      %21 = vector.load %arg6[%c0_14, %c0_15] : memref<16x128xf32, #tpu.memory_space<vmem>>, vector<16x128xf32>
      %22 = arith.addf %21, %14 : vector<16x128xf32>
      %c0_16 = arith.constant 0 : index
      %c0_17 = arith.constant 0 : index
      %23 = vector.load %arg6[%c0_16, %c0_17] : memref<16x128xf32, #tpu.memory_space<vmem>>, vector<16x128xf32>
      tpu.vector_store %arg6[%c0_16, %c0_17], %22 {strides = array<i32>} : memref<16x128xf32, #tpu.memory_space<vmem>>, vector<16x128xf32>,
    } else {
    }
    return
  }
  func.func @transform_0(%arg0: i32, %arg1: i32) -> (i32, i32) {
    %c0_i32 = arith.constant 0 : i32
    %c0_i32_0 = arith.constant 0 : i32
    return %arg0, %c0_i32 : i32, i32
  }
  func.func @transform_1(%arg0: i32, %arg1: i32) -> (i32, i32) {
    %c0_i32 = arith.constant 0 : i32
    %c0_i32_0 = arith.constant 0 : i32
    return %c0_i32, %arg1 : i32, i32
  }
  func.func @transform_2(%arg0: i32, %arg1: i32) -> (i32, i32) {
    %c0_i32 = arith.constant 0 : i32
    %c0_i32_0 = arith.constant 0 : i32
    return %c0_i32, %arg1 : i32, i32
  }
  func.func @transform_3(%arg0: i32, %arg1: i32) -> (i32, i32) {
    %c0_i32 = arith.constant 0 : i32
    %c0_i32_0 = arith.constant 0 : i32
    return %arg1, %c0_i32 : i32, i32
  }
  func.func @transform_4(%arg0: i32, %arg1: i32) -> (i32, i32) {
    %c0_i32 = arith.constant 0 : i32
    %c0_i32_0 = arith.constant 0 : i32
    return %arg0, %c0_i32 : i32, i32
  }
}

</mosaic_0001>

<llo_original>
// kernel: swiglu_mlp.1
$region0: #{swiglu_mlp.1}
  #allocation0 [shape = 'u32[]', space=smem, size = 0x4, offset = 0x4, fixed_abs, tag = 'smem constant byte address 0x4 - core index']
  #allocation1 [shape = 'u32[144,128]{1,0:T(1,128)}', space=vmem, size = 0x12000, scoped, tag = 'internal scratch']
  %s0 = inlined_call_operand.hbm [shape: f32[16,128], index: 0, kind: input, shape index: {}]
  %s1 = inlined_call_operand.hbm [shape: f32[128,256], index: 1, kind: input, shape index: {}]
  %s2 = inlined_call_operand.hbm [shape: f32[128,256], index: 2, kind: input, shape index: {}]
  %s3 = inlined_call_operand.hbm [shape: f32[256,128], index: 3, kind: input, shape index: {}]
  %s4 = inlined_call_operand.hbm [shape: f32[16,128], index: 4, kind: output, shape index: {}]
  %s5 = sld [smem:[#allocation0]]
  $region50: #{swiglu_mlp.1} parent=0
    _
  %s7 = ssub.s32 1, %s5
  %s8 = scalar_select 0, %s7, %s5
  $region1: #{swiglu_mlp.1} parent=0
    #allocation2 [shape = 'u8[8192]{0}', space=vmem, size = 0x2000, scoped, tag = 'input window, operand 0, single buffered']
    #allocation3 [shape = 's32[1]{0}', space=sflag, size = 0x4, scoped, tag = 'scoped memory for swiglu_mlp.1']
    #allocation4 [shape = 's32[1]{0}', space=sflag, size = 0x4, scoped, tag = 'scoped memory for swiglu_mlp.1']
    #allocation5 [shape = 'u8[131072]{0}', space=vmem, size = 0x20000, scoped, tag = 'input window, operand 1, single buffered']
    #allocation6 [shape = 's32[1]{0}', space=sflag, size = 0x4, scoped, tag = 'scoped memory for swiglu_mlp.1']
    #allocation7 [shape = 'u8[131072]{0}', space=vmem, size = 0x20000, scoped, tag = 'input window, operand 2, single buffered']
    #allocation8 [shape = 'u8[131072]{0}', space=vmem, size = 0x20000, scoped, tag = 'input window, operand 3, single buffered']
    #allocation9 [shape = 's32[1]{0}', space=sflag, size = 0x4, scoped, tag = 'scoped memory for swiglu_mlp.1']
    #allocation10 [shape = 'u8[8192]{0}', space=vmem, size = 0x2000, scoped, tag = 'output window, operand 0, single buffered']
    %9 = vsyncpa [#allocation3], 0
    %10 = vsyncpa [#allocation6], 0
    %11 = vsyncpa [#allocation9], 0
    %12 = vsyncpa [#allocation4], 0
    // Predicated region
    $region2: #{swiglu_mlp.1} parent=1 // pred_check
      _
    $region3: #{swiglu_mlp.1} parent=1 // pred_check_branch
      %14 = sbr.rel (0) target = $region5
    $region4: #{swiglu_mlp.1} parent=1 // pred_region
      %s16 = ssub.s32 256, 256
      %17 = vsyncadd [#allocation3], %s16
      %s18 = sshll.u32 [#allocation2], 4
      %s19 = int_to_ptr.vmem [resolvable:$true] %s18
      %24 = dma.hbm_to_vmem [thread:$0]  %s0, 256, %s19, [#allocation3], 128, 128, 8
    $region5: #{swiglu_mlp.1} parent=1 // pred_fallthru
      _
    // Predicated region
    $region6: #{swiglu_mlp.1} parent=1 // pred_check
      _
    $region7: #{swiglu_mlp.1} parent=1 // pred_check_branch
      %26 = sbr.rel (0) target = $region9
    $region8: #{swiglu_mlp.1} parent=1 // pred_region
      %s28 = ssub.s32 4096, 4096
      %29 = vsyncadd [#allocation6], %s28
      %s30 = sshll.u32 [#allocation5], 4
      %s31 = int_to_ptr.vmem [resolvable:$true] %s30
      %36 = dma.hbm_to_vmem [thread:$0]  %s1, 4096, %s31, [#allocation6], 256, 256, 16
    $region9: #{swiglu_mlp.1} parent=1 // pred_fallthru
      _
    // Predicated region
    $region10: #{swiglu_mlp.1} parent=1 // pred_check
      _
    $region11: #{swiglu_mlp.1} parent=1 // pred_check_branch
      %38 = sbr.rel (0) target = $region13
    $region12: #{swiglu_mlp.1} parent=1 // pred_region
      %s40 = ssub.s32 4096, 4096
      %41 = vsyncadd [#allocation6], %s40
      %s42 = sshll.u32 [#allocation7], 4
      %s43 = int_to_ptr.vmem [resolvable:$true] %s42
      %48 = dma.hbm_to_vmem [thread:$0]  %s2, 4096, %s43, [#allocation6], 256, 256, 16
    $region13: #{swiglu_mlp.1} parent=1 // pred_fallthru
      _
    // Predicated region
    $region14: #{swiglu_mlp.1} parent=1 // pred_check
      _
    $region15: #{swiglu_mlp.1} parent=1 // pred_check_branch
      %50 = sbr.rel (0) target = $region17
    $region16: #{swiglu_mlp.1} parent=1 // pred_region
      %s52 = ssub.s32 4096, 4096
      %53 = vsyncadd [#allocation9], %s52
      %s54 = sshll.u32 [#allocation8], 4
      %s55 = int_to_ptr.vmem [resolvable:$true] %s54
      %60 = dma.hbm_to_vmem [thread:$0]  %s3, 4096, %s55, [#allocation9], 128, 128, 8
    $region17: #{swiglu_mlp.1} parent=1 // pred_fallthru
      _
    // Predicated region
    $region18: #{swiglu_mlp.1} parent=1 // pred_check
      _
    $region19: #{swiglu_mlp.1} parent=1 // pred_check_branch
      %62 = sbr.rel (0) target = $region21
    $region20: #{swiglu_mlp.1} parent=1 // pred_region
      %63 = dma.done [#allocation3], 256
    $region21: #{swiglu_mlp.1} parent=1 // pred_fallthru
      _
    // Predicated region
    $region22: #{swiglu_mlp.1} parent=1 // pred_check
      _
    $region23: #{swiglu_mlp.1} parent=1 // pred_check_branch
      %65 = sbr.rel (0) target = $region25
    $region24: #{swiglu_mlp.1} parent=1 // pred_region
      %66 = dma.done [#allocation6], 4096
    $region25: #{swiglu_mlp.1} parent=1 // pred_fallthru
      _
    // Predicated region
    $region26: #{swiglu_mlp.1} parent=1 // pred_check
      _
    $region27: #{swiglu_mlp.1} parent=1 // pred_check_branch
      %68 = sbr.rel (0) target = $region29
    $region28: #{swiglu_mlp.1} parent=1 // pred_region
      %69 = dma.done [#allocation6], 4096
    $region29: #{swiglu_mlp.1} parent=1 // pred_fallthru
      _
    // Predicated region
    $region30: #{swiglu_mlp.1} parent=1 // pred_check
      _
    $region31: #{swiglu_mlp.1} parent=1 // pred_check_branch
      %71 = sbr.rel (0) target = $region33
    $region32: #{swiglu_mlp.1} parent=1 // pred_region
      %72 = dma.done [#allocation9], 4096
    $region33: #{swiglu_mlp.1} parent=1 // pred_fallthru
      _
    %v73 = vld [vmem:[#allocation2] sm:$0xff]
    %v74 = vld [vmem:[#allocation2 + $0x8] sm:$0xff]
    %v75 = vld [vmem:[#allocation5] sm:$0xff]
    %v76 = vld [vmem:[#allocation5 + $0x8] sm:$0xff]
    %v77 = vld [vmem:[#allocation5 + $0x10] sm:$0xff]
    %v78 = vld [vmem:[#allocation5 + $0x18] sm:$0xff]
    %v79 = vld [vmem:[#allocation5 + $0x20] sm:$0xff]
    %v80 = vld [vmem:[#allocation5 + $0x28] sm:$0xff]
    %v81 = vld [vmem:[#allocation5 + $0x30] sm:$0xff]
    %v82 = vld [vmem:[#allocation5 + $0x38] sm:$0xff]
    %v83 = vld [vmem:[#allocation5 + $0x40] sm:$0xff]
    %v84 = vld [vmem:[#allocation5 + $0x48] sm:$0xff]
    %v85 = vld [vmem:[#allocation5 + $0x50] sm:$0xff]
    %v86 = vld [vmem:[#allocation5 + $0x58] sm:$0xff]
    %v87 = vld [vmem:[#allocation5 + $0x60] sm:$0xff]
    %v88 = vld [vmem:[#allocation5 + $0x68] sm:$0xff]
    %v89 = vld [vmem:[#allocation5 + $0x70] sm:$0xff]
    %v90 = vld [vmem:[#allocation5 + $0x78] sm:$0xff]
    %v91 = vld [vmem:[#allocation5 + $0x80] sm:$0xff]
    %v92 = vld [vmem:[#allocation5 + $0x88] sm:$0xff]
    %v93 = vld [vmem:[#allocation5 + $0x90] sm:$0xff]
    %v94 = vld [vmem:[#allocation5 + $0x98] sm:$0xff]
    %v95 = vld [vmem:[#allocation5 + $0xa0] sm:$0xff]
    %v96 = vld [vmem:[#allocation5 + $0xa8] sm:$0xff]
    %v97 = vld [vmem:[#allocation5 + $0xb0] sm:$0xff]
    %v98 = vld [vmem:[#allocation5 + $0xb8] sm:$0xff]
    %v99 = vld [vmem:[#allocation5 + $0xc0] sm:$0xff]
    %v100 = vld [vmem:[#allocation5 + $0xc8] sm:$0xff]
    %v101 = vld [vmem:[#allocation5 + $0xd0] sm:$0xff]
    %v102 = vld [vmem:[#allocation5 + $0xd8] sm:$0xff]
    %v103 = vld [vmem:[#allocation5 + $0xe0] sm:$0xff]
    %v104 = vld [vmem:[#allocation5 + $0xe8] sm:$0xff]
    %v105 = vld [vmem:[#allocation5 + $0xf0] sm:$0xff]
    %v106 = vld [vmem:[#allocation5 + $0xf8] sm:$0xff]
    %107 = vmatprep.subr.mxu0 %v76
    %108 = vmatpush1.msra.mxu0 %v75
    %109 = vmatprep.subr.mxu0 %v78
    %110 = vmatpush1.msra.mxu0 %v77
    %111 = vmatprep.subr.mxu0 %v80
    %112 = vmatpush1.msra.mxu0 %v79
    %113 = vmatprep.subr.mxu0 %v82
    %114 = vmatpush1.msra.mxu0 %v81
    %115 = vmatprep.subr.mxu0 %v84
    %116 = vmatpush1.msra.mxu0 %v83
    %117 = vmatprep.subr.mxu0 %v86
    %118 = vmatpush1.msra.mxu0 %v85
    %119 = vmatprep.subr.mxu0 %v88
    %120 = vmatpush1.msra.mxu0 %v87
    %121 = vmatprep.subr.mxu0 %v90
    %122 = vmatpush1.msra.mxu0 %v89
    %123 = vmatprep.subr.mxu0 %v92
    %124 = vmatpush1.msra.mxu0 %v91
    %125 = vmatprep.subr.mxu0 %v94
    %126 = vmatpush1.msra.mxu0 %v93
    %127 = vmatprep.subr.mxu0 %v96
    %128 = vmatpush1.msra.mxu0 %v95
    %129 = vmatprep.subr.mxu0 %v98
    %130 = vmatpush1.msra.mxu0 %v97
    %131 = vmatprep.subr.mxu0 %v100
    %132 = vmatpush1.msra.mxu0 %v99
    %133 = vmatprep.subr.mxu0 %v102
    %134 = vmatpush1.msra.mxu0 %v101
    %135 = vmatprep.subr.mxu0 %v104
    %136 = vmatpush1.msra.mxu0 %v103
    %137 = vmatprep.subr.mxu0 %v106
    %138 = vmatpush1.msra.mxu0 %v105
    %139 = vmatprep.subr.mxu0 0.0
    %140 = vmatpush1.msra.mxu0 0.0
    %141 = vmatprep.subr.mxu0 0.0
    %142 = vmatpush1.msra.mxu0 0.0
    %143 = vmatprep.subr.mxu0 0.0
    %144 = vmatpush1.msra.mxu0 0.0
    %145 = vmatprep.subr.mxu0 0.0
    %146 = vmatpush1.msra.mxu0 0.0
    %147 = vmatprep.subr.mxu0 0.0
    %148 = vmatpush1.msra.mxu0 0.0
    %149 = vmatprep.subr.mxu0 0.0
    %150 = vmatpush1.msra.mxu0 0.0
    %151 = vmatprep.subr.mxu0 0.0
    %152 = vmatpush1.msra.mxu0 0.0
    %153 = vmatprep.subr.mxu0 0.0
    %154 = vmatpush1.msra.mxu0 0.0
    %155 = vmatprep.subr.mxu0 0.0
    %156 = vmatpush1.msra.mxu0 0.0
    %157 = vmatprep.subr.mxu0 0.0
    %158 = vmatpush1.msra.mxu0 0.0
    %159 = vmatprep.subr.mxu0 0.0
    %160 = vmatpush1.msra.mxu0 0.0
    %161 = vmatprep.subr.mxu0 0.0
    %162 = vmatpush1.msra.mxu0 0.0
    %163 = vmatprep.subr.mxu0 0.0
    %164 = vmatpush1.msra.mxu0 0.0
    %165 = vmatprep.subr.mxu0 0.0
    %166 = vmatpush1.msra.mxu0 0.0
    %167 = vmatprep.subr.mxu0 0.0
    %168 = vmatpush1.msra.mxu0 0.0
    %169 = vmatprep.subr.mxu0 0.0
    %170 = vmatpush1.msra.mxu0 0.0
    %171 = vmatprep.mubr.f32.mxu0 0.0
    %172 = vmatmul.mubr.f32.gmra.mrb[0].mxu0 %v73
    %v173 = vpop.f32.mrb[0].mxu0
    %v174 = vadd.f32 0.0, %v173
    %v175 = vpop.f32.mrb[0].mxu0
    %v176 = vadd.f32 0.0, %v175
    %177 = vmatprep.mubr.f32.mxu0 0.0
    %178 = vmatmul.mubr.f32.gmra.mrb[0].mxu0 %v74
    %v179 = vpop.f32.mrb[0].mxu0
    %v180 = vadd.f32 0.0, %v179
    %v181 = vpop.f32.mrb[0].mxu0
    %v182 = vadd.f32 0.0, %v181
    %183 = vdwg.mxu0
    %v184 = vld [vmem:[#allocation7] sm:$0xff]
    %v185 = vld [vmem:[#allocation7 + $0x8] sm:$0xff]
    %v186 = vld [vmem:[#allocation7 + $0x10] sm:$0xff]
    %v187 = vld [vmem:[#allocation7 + $0x18] sm:$0xff]
    %v188 = vld [vmem:[#allocation7 + $0x20] sm:$0xff]
    %v189 = vld [vmem:[#allocation7 + $0x28] sm:$0xff]
    %v190 = vld [vmem:[#allocation7 + $0x30] sm:$0xff]
    %v191 = vld [vmem:[#allocation7 + $0x38] sm:$0xff]
    %v192 = vld [vmem:[#allocation7 + $0x40] sm:$0xff]
    %v193 = vld [vmem:[#allocation7 + $0x48] sm:$0xff]
    %v194 = vld [vmem:[#allocation7 + $0x50] sm:$0xff]
    %v195 = vld [vmem:[#allocation7 + $0x58] sm:$0xff]
    %v196 = vld [vmem:[#allocation7 + $0x60] sm:$0xff]
    %v197 = vld [vmem:[#allocation7 + $0x68] sm:$0xff]
    %v198 = vld [vmem:[#allocation7 + $0x70] sm:$0xff]
    %v199 = vld [vmem:[#allocation7 + $0x78] sm:$0xff]
    %v200 = vld [vmem:[#allocation7 + $0x80] sm:$0xff]
    %v201 = vld [vmem:[#allocation7 + $0x88] sm:$0xff]
    %v202 = vld [vmem:[#allocation7 + $0x90] sm:$0xff]
    %v203 = vld [vmem:[#allocation7 + $0x98] sm:$0xff]
    %v204 = vld [vmem:[#allocation7 + $0xa0] sm:$0xff]
    %v205 = vld [vmem:[#allocation7 + $0xa8] sm:$0xff]
    %v206 = vld [vmem:[#allocation7 + $0xb0] sm:$0xff]
    %v207 = vld [vmem:[#allocation7 + $0xb8] sm:$0xff]
    %v208 = vld [vmem:[#allocation7 + $0xc0] sm:$0xff]
    %v209 = vld [vmem:[#allocation7 + $0xc8] sm:$0xff]
    %v210 = vld [vmem:[#allocation7 + $0xd0] sm:$0xff]
    %v211 = vld [vmem:[#allocation7 + $0xd8] sm:$0xff]
    %v212 = vld [vmem:[#allocation7 + $0xe0] sm:$0xff]
    %v213 = vld [vmem:[#allocation7 + $0xe8] sm:$0xff]
    %v214 = vld [vmem:[#allocation7 + $0xf0] sm:$0xff]
    %v215 = vld [vmem:[#allocation7 + $0xf8] sm:$0xff]
    %216 = vmatprep.subr.mxu0 %v185
    %217 = vmatpush1.msra.mxu0 %v184
    %218 = vmatprep.subr.mxu0 %v187
    %219 = vmatpush1.msra.mxu0 %v186
    %220 = vmatprep.subr.mxu0 %v189
    %221 = vmatpush1.msra.mxu0 %v188
    %222 = vmatprep.subr.mxu0 %v191
    %223 = vmatpush1.msra.mxu0 %v190
    %224 = vmatprep.subr.mxu0 %v193
    %225 = vmatpush1.msra.mxu0 %v192
    %226 = vmatprep.subr.mxu0 %v195
    %227 = vmatpush1.msra.mxu0 %v194
    %228 = vmatprep.subr.mxu0 %v197
    %229 = vmatpush1.msra.mxu0 %v196
    %230 = vmatprep.subr.mxu0 %v199
    %231 = vmatpush1.msra.mxu0 %v198
    %232 = vmatprep.subr.mxu0 %v201
    %233 = vmatpush1.msra.mxu0 %v200
    %234 = vmatprep.subr.mxu0 %v203
    %235 = vmatpush1.msra.mxu0 %v202
    %236 = vmatprep.subr.mxu0 %v205
    %237 = vmatpush1.msra.mxu0 %v204
    %238 = vmatprep.subr.mxu0 %v207
    %239 = vmatpush1.msra.mxu0 %v206
    %240 = vmatprep.subr.mxu0 %v209
    %241 = vmatpush1.msra.mxu0 %v208
    %242 = vmatprep.subr.mxu0 %v211
    %243 = vmatpush1.msra.mxu0 %v210
    %244 = vmatprep.subr.mxu0 %v213
    %245 = vmatpush1.msra.mxu0 %v212
    %246 = vmatprep.subr.mxu0 %v215
    %247 = vmatpush1.msra.mxu0 %v214
    %248 = vmatprep.subr.mxu0 0.0
    %249 = vmatpush1.msra.mxu0 0.0
    %250 = vmatprep.subr.mxu0 0.0
    %251 = vmatpush1.msra.mxu0 0.0
    %252 = vmatprep.subr.mxu0 0.0
    %253 = vmatpush1.msra.mxu0 0.0
    %254 = vmatprep.subr.mxu0 0.0
    %255 = vmatpush1.msra.mxu0 0.0
    %256 = vmatprep.subr.mxu0 0.0
    %257 = vmatpush1.msra.mxu0 0.0
    %258 = vmatprep.subr.mxu0 0.0
    %259 = vmatpush1.msra.mxu0 0.0
    %260 = vmatprep.subr.mxu0 0.0
    %261 = vmatpush1.msra.mxu0 0.0
    %262 = vmatprep.subr.mxu0 0.0
    %263 = vmatpush1.msra.mxu0 0.0
    %264 = vmatprep.subr.mxu0 0.0
    %265 = vmatpush1.msra.mxu0 0.0
    %266 = vmatprep.subr.mxu0 0.0
    %267 = vmatpush1.msra.mxu0 0.0
    %268 = vmatprep.subr.mxu0 0.0
    %269 = vmatpush1.msra.mxu0 0.0
    %270 = vmatprep.subr.mxu0 0.0
    %271 = vmatpush1.msra.mxu0 0.0
    %272 = vmatprep.subr.mxu0 0.0
    %273 = vmatpush1.msra.mxu0 0.0
    %274 = vmatprep.subr.mxu0 0.0
    %275 = vmatpush1.msra.mxu0 0.0
    %276 = vmatprep.subr.mxu0 0.0
    %277 = vmatpush1.msra.mxu0 0.0
    %278 = vmatprep.subr.mxu0 0.0
    %279 = vmatpush1.msra.mxu0 0.0
    %280 = vmatprep.mubr.f32.mxu0 0.0
    %281 = vmatmul.mubr.f32.gmra.mrb[0].mxu0 %v73
    %v282 = vpop.f32.mrb[0].mxu0
    %v283 = vadd.f32 0.0, %v282
    %v284 = vpop.f32.mrb[0].mxu0
    %v285 = vadd.f32 0.0, %v284
    %286 = vmatprep.mubr.f32.mxu0 0.0
    %287 = vmatmul.mubr.f32.gmra.mrb[0].mxu0 %v74
    %v288 = vpop.f32.mrb[0].mxu0
    %v289 = vadd.f32 0.0, %v288
    %v290 = vpop.f32.mrb[0].mxu0
    %v291 = vadd.f32 0.0, %v290
    %292 = vdwg.mxu0
    %v293 = vsub.f32 0.0, %v174
    %v294 = vsub.f32 0.0, %v176
    %v295 = vsub.f32 0.0, %v180
    %v296 = vsub.f32 0.0, %v182
    %v297 = vmul.f32 %v293, 1.442695
    %v298 = vpow.pop %v297
    %v299 = vmul.f32 %v294, 1.442695
    %v300 = vpow.pop %v299
    %v301 = vmul.f32 %v295, 1.442695
    %v302 = vpow.pop %v301
    %v303 = vmul.f32 %v296, 1.442695
    %v304 = vpow.pop %v303
    %v305 = vadd.f32 %v298, 1.0
    %v306 = vadd.f32 %v300, 1.0
    %v307 = vadd.f32 %v302, 1.0
    %v308 = vadd.f32 %v304, 1.0
    %v309 = vrcp.pop %v305
    %v310 = vrcp.pop %v306
    %v311 = vrcp.pop %v307
    %v312 = vrcp.pop %v308
    %v313 = vmul.f32 %v174, %v309
    %v314 = vmul.f32 %v176, %v310
    %v315 = vmul.f32 %v180, %v311
    %v316 = vmul.f32 %v182, %v312
    %v317 = vmul.f32 %v313, %v283
    %v318 = vmul.f32 %v314, %v285
    %v319 = vmul.f32 %v315, %v289
    %v320 = vmul.f32 %v316, %v291
    %v321 = vld [vmem:[#allocation8] sm:$0xff]
    %v322 = vld [vmem:[#allocation8 + $0x8] sm:$0xff]
    %v323 = vld [vmem:[#allocation8 + $0x10] sm:$0xff]
    %v324 = vld [vmem:[#allocation8 + $0x18] sm:$0xff]
    %v325 = vld [vmem:[#allocation8 + $0x20] sm:$0xff]
    %v326 = vld [vmem:[#allocation8 + $0x28] sm:$0xff]
    %v327 = vld [vmem:[#allocation8 + $0x30] sm:$0xff]
    %v328 = vld [vmem:[#allocation8 + $0x38] sm:$0xff]
    %v329 = vld [vmem:[#allocation8 + $0x40] sm:$0xff]
    %v330 = vld [vmem:[#allocation8 + $0x48] sm:$0xff]
    %v331 = vld [vmem:[#allocation8 + $0x50] sm:$0xff]
    %v332 = vld [vmem:[#allocation8 + $0x58] sm:$0xff]
    %v333 = vld [vmem:[#allocation8 + $0x60] sm:$0xff]
    %v334 = vld [vmem:[#allocation8 + $0x68] sm:$0xff]
    %v335 = vld [vmem:[#allocation8 + $0x70] sm:$0xff]
    %v336 = vld [vmem:[#allocation8 + $0x78] sm:$0xff]
    %v337 = vld [vmem:[#allocation8 + $0x80] sm:$0xff]
    %v338 = vld [vmem:[#allocation8 + $0x88] sm:$0xff]
    %v339 = vld [vmem:[#allocation8 + $0x90] sm:$0xff]
    %v340 = vld [vmem:[#allocation8 + $0x98] sm:$0xff]
    %v341 = vld [vmem:[#allocation8 + $0xa0] sm:$0xff]
    %v342 = vld [vmem:[#allocation8 + $0xa8] sm:$0xff]
    %v343 = vld [vmem:[#allocation8 + $0xb0] sm:$0xff]
    %v344 = vld [vmem:[#allocation8 + $0xb8] sm:$0xff]
    %v345 = vld [vmem:[#allocation8 + $0xc0] sm:$0xff]
    %v346 = vld [vmem:[#allocation8 + $0xc8] sm:$0xff]
    %v347 = vld [vmem:[#allocation8 + $0xd0] sm:$0xff]
    %v348 = vld [vmem:[#allocation8 + $0xd8] sm:$0xff]
    %v349 = vld [vmem:[#allocation8 + $0xe0] sm:$0xff]
    %v350 = vld [vmem:[#allocation8 + $0xe8] sm:$0xff]
    %v351 = vld [vmem:[#allocation8 + $0xf0] sm:$0xff]
    %v352 = vld [vmem:[#allocation8 + $0xf8] sm:$0xff]
    %353 = vmatprep.subr.mxu0 0.0
    %354 = vmatpush1.msra.mxu0 %v321
    %355 = vmatprep.subr.mxu0 0.0
    %356 = vmatpush1.msra.mxu0 %v322
    %357 = vmatprep.subr.mxu0 0.0
    %358 = vmatpush1.msra.mxu0 %v323
    %359 = vmatprep.subr.mxu0 0.0
    %360 = vmatpush1.msra.mxu0 %v324
    %361 = vmatprep.subr.mxu0 0.0
    %362 = vmatpush1.msra.mxu0 %v325
    %363 = vmatprep.subr.mxu0 0.0
    %364 = vmatpush1.msra.mxu0 %v326
    %365 = vmatprep.subr.mxu0 0.0
    %366 = vmatpush1.msra.mxu0 %v327
    %367 = vmatprep.subr.mxu0 0.0
    %368 = vmatpush1.msra.mxu0 %v328
    %369 = vmatprep.subr.mxu0 0.0
    %370 = vmatpush1.msra.mxu0 %v329
    %371 = vmatprep.subr.mxu0 0.0
    %372 = vmatpush1.msra.mxu0 %v330
    %373 = vmatprep.subr.mxu0 0.0
    %374 = vmatpush1.msra.mxu0 %v331
    %375 = vmatprep.subr.mxu0 0.0
    %376 = vmatpush1.msra.mxu0 %v332
    %377 = vmatprep.subr.mxu0 0.0
    %378 = vmatpush1.msra.mxu0 %v333
    %379 = vmatprep.subr.mxu0 0.0
    %380 = vmatpush1.msra.mxu0 %v334
    %381 = vmatprep.subr.mxu0 0.0
    %382 = vmatpush1.msra.mxu0 %v335
    %383 = vmatprep.subr.mxu0 0.0
    %384 = vmatpush1.msra.mxu0 %v336
    %385 = vmatprep.subr.mxu0 0.0
    %386 = vmatpush1.msra.mxu0 %v337
    %387 = vmatprep.subr.mxu0 0.0
    %388 = vmatpush1.msra.mxu0 %v338
    %389 = vmatprep.subr.mxu0 0.0
    %390 = vmatpush1.msra.mxu0 %v339
    %391 = vmatprep.subr.mxu0 0.0
    %392 = vmatpush1.msra.mxu0 %v340
    %393 = vmatprep.subr.mxu0 0.0
    %394 = vmatpush1.msra.mxu0 %v341
    %395 = vmatprep.subr.mxu0 0.0
    %396 = vmatpush1.msra.mxu0 %v342
    %397 = vmatprep.subr.mxu0 0.0
    %398 = vmatpush1.msra.mxu0 %v343
    %399 = vmatprep.subr.mxu0 0.0
    %400 = vmatpush1.msra.mxu0 %v344
    %401 = vmatprep.subr.mxu0 0.0
    %402 = vmatpush1.msra.mxu0 %v345
    %403 = vmatprep.subr.mxu0 0.0
    %404 = vmatpush1.msra.mxu0 %v346
    %405 = vmatprep.subr.mxu0 0.0
    %406 = vmatpush1.msra.mxu0 %v347
    %407 = vmatprep.subr.mxu0 0.0
    %408 = vmatpush1.msra.mxu0 %v348
    %409 = vmatprep.subr.mxu0 0.0
    %410 = vmatpush1.msra.mxu0 %v349
    %411 = vmatprep.subr.mxu0 0.0
    %412 = vmatpush1.msra.mxu0 %v350
    %413 = vmatprep.subr.mxu0 0.0
    %414 = vmatpush1.msra.mxu0 %v351
    %415 = vmatprep.subr.mxu0 0.0
    %416 = vmatpush1.msra.mxu0 %v352
    %417 = vmatprep.mubr.f32.mxu0 %v318
    %418 = vmatmul.mubr.f32.gmra.mrb[0].mxu0 %v317
    %v419 = vpop.f32.mrb[0].mxu0
    %v420 = vadd.f32 0.0, %v419
    %v421 = vpop.f32.mrb[0].mxu0
    %422 = vmatprep.mubr.f32.mxu0 %v320
    %423 = vmatmul.mubr.f32.gmra.mrb[0].mxu0 %v319
    %v424 = vpop.f32.mrb[0].mxu0
    %v425 = vadd.f32 0.0, %v424
    %v426 = vpop.f32.mrb[0].mxu0
    %427 = vdwg.mxu0
    %p428 = scmp.eq.s32.totalorder 0, 0
    // Predicated region
    $region34: #{swiglu_mlp.1} parent=1 // pred_check
      %p429 = pneg %p428
    $region35: #{swiglu_mlp.1} parent=1 // pred_check_branch
      %431 = sbr.rel (%p429) target = $region37
    $region36: #{swiglu_mlp.1} parent=1 // pred_region
      %432 = vst [vmem:[#allocation10] sm:$0xff] %v420
      %433 = vst [vmem:[#allocation10 + $0x8] sm:$0xff] %v425
    $region37: #{swiglu_mlp.1} parent=1 // pred_fallthru
      _
    %p434 = scmp.gt.s32.totalorder 0, 0
    // Predicated region
    $region38: #{swiglu_mlp.1} parent=1 // pred_check
      %p435 = pneg %p434
    $region39: #{swiglu_mlp.1} parent=1 // pred_check_branch
      %437 = sbr.rel (%p435) target = $region41
    $region40: #{swiglu_mlp.1} parent=1 // pred_region
      %v438 = vld [vmem:[#allocation10] sm:$0xff]
      %v439 = vld [vmem:[#allocation10 + $0x8] sm:$0xff]
      %v440 = vadd.f32 %v438, %v420
      %v441 = vadd.f32 %v439, %v425
      %442 = vst [vmem:[#allocation10] sm:$0xff] %v440
      %443 = vst [vmem:[#allocation10 + $0x8] sm:$0xff] %v441
    $region41: #{swiglu_mlp.1} parent=1 // pred_fallthru
      _
    // Predicated region
    $region42: #{swiglu_mlp.1} parent=1 // pred_check
      _
    $region43: #{swiglu_mlp.1} parent=1 // pred_check_branch
      %445 = sbr.rel (0) target = $region45
    $region44: #{swiglu_mlp.1} parent=1 // pred_region
      %s447 = ssub.s32 256, 256
      %448 = vsyncadd [#allocation4], %s447
      %s449 = sshll.u32 [#allocation10], 4
      %s450 = int_to_ptr.vmem [resolvable:$true] %s449
      %455 = dma.vmem_to_hbm [thread:$0]  %s450, 256, %s4, [#allocation4], 128, 128, 8
    $region45: #{swiglu_mlp.1} parent=1 // pred_fallthru
      _
    // Predicated region
    $region46: #{swiglu_mlp.1} parent=1 // pred_check
      _
    $region47: #{swiglu_mlp.1} parent=1 // pred_check_branch
      %457 = sbr.rel (0) target = $region49
    $region48: #{swiglu_mlp.1} parent=1 // pred_region
      %458 = dma.done [#allocation4], 256
    $region49: #{swiglu_mlp.1} parent=1 // pred_fallthru
      _
    %459 = vsyncpa [#allocation3], 1
    %460 = vsyncpa [#allocation6], 1
    %461 = vsyncpa [#allocation9], 1
    %462 = vsyncpa [#allocation4], 1

</llo_original>
